<compile_context>
chip_gen: v6e
topology: v6e:2x2x1
jax: 0.10.0
libtpu: 0.0.40
codegen_flags: <defaults>
</compile_context>

<pallas_src>
import jax
import jax.numpy as jnp
from jax.experimental import pallas as pl
from jax.experimental.pallas import tpu as pltpu


_COMPUTE_DTYPE = jnp.bfloat16   # MXU operand dtype (accumulation stays f32)
_OUT_LANES = 128                # lane-dense writeback width (pooled | z | pad)
_TARGET_MXU_ROWS = 256          # v6e/v7x MXU height; also keeps v5e's MXU full


# ----------------------------------------------------------------------------
# Fused Pallas kernel: conv(3x3, same) + ReLU + global-avg-pool + Linear
# ----------------------------------------------------------------------------
def _fused_encoder_kernel(x_ref, wk_ref, brow_ref, selall_ref, biasall_ref,
                          out_ref):
    # x_ref      : (B_tile, H, Kc)   bf16  row-im2col'd zero-padded images
    # wk_ref     : (Kc, W*Cout)      bf16  flattened block-Toeplitz conv weight
    # brow_ref   : (1, W*Cout)       f32   conv bias tiled over w
    # selall_ref : (W*Cout, 128)     f32   [pool-selector | pool-sel @ W_fc | 0]
    # biasall_ref: (1, 128)          f32   [0 | b_fc | 0]
    # out_ref    : (B_tile, 128)     f32   [pooled | z | 0]
    bt, H, Kc = x_ref.shape
    wcout = brow_ref.shape[-1]

    # One MXU matmul over the whole (B_tile*H, Kc) LHS: the full conv for all
    # rows of all images in this grid step.  f32 accumulation.
    lhs = x_ref[...].reshape(bt * H, Kc)
    acc = jnp.dot(lhs, wk_ref[...], preferred_element_type=jnp.float32)

    # Bias + ReLU in f32 (VPU).  The feature map never leaves VMEM/vregs.
    feat = jnp.maximum(acc + brow_ref[...], 0.0)              # (bt*H, W*Cout)

    # Global average pool over H: per-image sublane sum.
    if bt == 1:
        col_sum = jnp.sum(feat, axis=0, keepdims=True)        # (1, W*Cout)
    else:
        col_sum = jnp.sum(feat.reshape(bt, H, wcout), axis=1)  # (bt, W*Cout)

    # Fused epilogue matmul: lanes [0:Cout] -> pooled (1/(H*W) folded into the
    # selector), lanes [Cout:Cout+D] -> z = pooled @ W_fc + b_fc.  Single
    # lane-dense 128-wide store.
    out = jnp.dot(col_sum, selall_ref[...],
                  preferred_element_type=jnp.float32) + biasall_ref[...]
    out_ref[...] = out.astype(out_ref.dtype)


# ----------------------------------------------------------------------------
# Weight preprocessing (done ONCE, cached; never inside the per-call forward)
# ----------------------------------------------------------------------------
def _build_toeplitz_weights(w_conv, W):
    """(Kh, Kw, Cin, Cout) -> (Kh, (W+Kw-1)*Cin, W*Cout) block-Toeplitz.

    Wk[kh][w'*Cin + c, w*Cout + o] = w_conv[kh, w'-w, c, o] if 0 <= w'-w < Kw
    so that feat_row[h] = sum_kh x_pad_row[h+kh] @ Wk[kh].
    """
    Kh, Kw, Cin, Cout = w_conv.shape
    wprime = jnp.arange(W + Kw - 1)
    wout = jnp.arange(W)
    kw_idx = wprime[:, None] - wout[None, :]                  # (W+Kw-1, W)
    valid = (kw_idx >= 0) & (kw_idx < Kw)
    kw_c = jnp.clip(kw_idx, 0, Kw - 1)
    wt = w_conv[:, kw_c, :, :]                                # (Kh, W+Kw-1, W, Cin, Cout)
    wt = jnp.where(valid[None, :, :, None, None], wt, 0.0)
    wt = wt.transpose(0, 1, 3, 2, 4).reshape(Kh, (W + Kw - 1) * Cin, W * Cout)
    return wt


def _prepare_constants(params, H, W, out_lanes=_OUT_LANES):
    """Build all kernel weight operands once (flattened Toeplitz conv weight,
    tiled conv bias, fused pooling/FC selector, fused bias row)."""
    w_conv = jnp.asarray(params["w_conv"], jnp.float32)
    Kh, Kw, Cin, Cout = w_conv.shape
    D = params["w_fc"].shape[-1]
    assert Cout + D <= out_lanes, "pooled+z must fit one 128-lane output row"

    wk = _build_toeplitz_weights(w_conv, W)
    wk_flat = wk.reshape(Kh * (W + Kw - 1) * Cin, W * Cout).astype(_COMPUTE_DTYPE)

    brow = jnp.tile(jnp.asarray(params["b_conv"], jnp.float32), W)
    brow = brow.reshape(1, W * Cout)

    # Pooling selector (mean factor folded in) and its fusion with W_fc so the
    # epilogue is a single matmul off col_sum (no serial pooled -> z chain).
    sel = jnp.tile(jnp.eye(Cout, dtype=jnp.float32), (W, 1)) / float(H * W)
    sel_fc = sel @ jnp.asarray(params["w_fc"], jnp.float32)           # (W*Cout, D)
    selall = jnp.zeros((W * Cout, out_lanes), jnp.float32)
    selall = selall.at[:, :Cout].set(sel)
    selall = selall.at[:, Cout:Cout + D].set(sel_fc)

    biasall = jnp.zeros((1, out_lanes), jnp.float32)
    biasall = biasall.at[0, Cout:Cout + D].set(
        jnp.asarray(params["b_fc"], jnp.float32))

    return {"wk": wk_flat, "brow": brow, "selall": selall, "biasall": biasall}


def _pick_batch_tile(B, H):
    """Stack B_tile images along the matmul M axis (target ~256 rows), but keep
    >= 2 grid steps when B >= 2 so v7x's second TensorCore has work."""
    bt = max(1, _TARGET_MXU_ROWS // max(H, 1))
    if B >= 2:
        bt = min(bt, pl.cdiv(B, 2))
    return max(1, min(bt, B))


# ----------------------------------------------------------------------------
# Jitted forward: cheap input prep (one XLA fusion) + single pallas_call
# ----------------------------------------------------------------------------
def _encoder_forward_impl(consts, x_nchw, *, kh, cout, dim_l, batch_tile):
    B, Cin, H, W = x_nchw.shape
    pad = (kh - 1) // 2   # 'same' conv

    # Input prep (fuses into one XLA op): NCHW -> NHWC, zero-pad, row-flatten,
    # row-only im2col (kh shifted row views lane-concatenated), bf16 cast.
    # The padded input is materialized in HBM exactly once, in bf16.
    x_nhwc = jnp.transpose(x_nchw, (0, 2, 3, 1))
    xp = jnp.pad(x_nhwc, ((0, 0), (pad, pad), (pad, pad), (0, 0)))
    xrow = xp.reshape(B, H + kh - 1, (W + kh - 1) * Cin)
    x3 = jnp.concatenate([xrow[:, r:r + H, :] for r in range(kh)], axis=-1)
    x3 = x3.astype(_COMPUTE_DTYPE)                # (B, H, kh*(W+kh-1)*Cin)

    bt = batch_tile
    n_steps = pl.cdiv(B, bt)
    Bp = n_steps * bt
    if Bp != B:
        x3 = jnp.pad(x3, ((0, Bp - B), (0, 0), (0, 0)))

    Kc = x3.shape[-1]
    WCout = consts["brow"].shape[-1]
    out_lanes = consts["selall"].shape[-1]

    # Honest cost hint: tiny, HBM/latency-bound kernel.
    flops = Bp * (2 * H * Kc * WCout + 2 * WCout * out_lanes)
    bytes_accessed = (x3.size * x3.dtype.itemsize
                      + consts["wk"].size * consts["wk"].dtype.itemsize
                      + (consts["brow"].size + consts["selall"].size
                         + consts["biasall"].size) * 4
                      + Bp * out_lanes * 4)

    out = pl.pallas_call(
        _fused_encoder_kernel,
        out_shape=jax.ShapeDtypeStruct((n_steps, bt, out_lanes), jnp.float32),
        grid=(n_steps,),
        in_specs=[
            # B_tile images per grid step, stacked on the matmul M axis.
            pl.BlockSpec((bt, H, Kc), lambda b: (b, 0, 0)),
            # Weights / constants: constant index maps -> stay VMEM-resident.
            pl.BlockSpec((Kc, WCout), lambda b: (0, 0)),
            pl.BlockSpec((1, WCout), lambda b: (0, 0)),
            pl.BlockSpec((WCout, out_lanes), lambda b: (0, 0)),
            pl.BlockSpec((1, out_lanes), lambda b: (0, 0)),
        ],
        out_specs=pl.BlockSpec((None, bt, out_lanes), lambda b: (b, 0, 0)),
        compiler_params=pltpu.CompilerParams(
            dimension_semantics=("parallel",)),    # batch across TCs on v7x
        cost_estimate=pl.CostEstimate(flops=flops, transcendentals=0,
                                      bytes_accessed=bytes_accessed),
    )(x3, consts["wk"], consts["brow"], consts["selall"], consts["biasall"])

    out = out.reshape(Bp, out_lanes)[:B]
    pooled = out[:, :cout]
    z = out[:, cout:cout + dim_l]
    return z, pooled


_encoder_forward_jit = jax.jit(
    _encoder_forward_impl,
    static_argnames=("kh", "cout", "dim_l", "batch_tile"))


# ----------------------------------------------------------------------------
# EncoderExtractor equivalent
# ----------------------------------------------------------------------------
class PallasEncoderExtractor:
    """Mirrors EncoderExtractor.forward for the synthetic ConvEncoder.

    .eval() -> no-op (kernel is inference-only); .detach() -> stop_gradient;
    ModelOutput -> plain dict {'z': {...}, 'attrs': {'latents': {...}}}.
    """

    def __init__(self, params, source_id: int):
        self._params = params
        self._source_id = source_id
        self._consts_cache = {}   # (H, W) -> prebuilt kernel constants

    def _get_consts(self, H, W):
        key = (H, W)
        if key not in self._consts_cache:
            self._consts_cache[key] = _prepare_constants(self._params, H, W)
        return self._consts_cache[key]

    def __call__(self, x_dict):
        x = x_dict[str(self._source_id)]
        B, Cin, H, W = x.shape
        consts = self._get_consts(H, W)
        kh = self._params["w_conv"].shape[0]
        cout = self._params["w_conv"].shape[-1]
        dim_l = self._params["w_fc"].shape[-1]
        bt = _pick_batch_tile(B, H)

        z, pooled = _encoder_forward_jit(consts, x, kh=kh, cout=cout,
                                         dim_l=dim_l, batch_tile=bt)
        z = jax.lax.stop_gradient(z)
        latents = {"pooled": jax.lax.stop_gradient(pooled)}
        if z.ndim == 1:
            z = z[None, :]
        return {"z": {self._source_id: z}, "attrs": {"latents": latents}}


# ----------------------------------------------------------------------------
# Synthetic encoder params + pure-JAX reference (for validation only)
# ----------------------------------------------------------------------------
def init_encoder_params(key, cin=4, cout=16, dim_l=32):
    k1, k2, k3, k4 = jax.random.split(key, 4)
    return {
        "w_conv": jax.random.normal(k1, (3, 3, cin, cout), jnp.float32) * 0.1,
        "b_conv": jax.random.normal(k2, (cout,), jnp.float32) * 0.01,
        "w_fc": jax.random.normal(k3, (cout, dim_l), jnp.float32) * 0.1,
        "b_fc": jax.random.normal(k4, (dim_l,), jnp.float32) * 0.01,
    }


def _reference_forward(params, x_nchw):
    """Pure-JAX f32 reference of the ConvEncoder forward."""
    Kh, Kw, Cin, Cout = params["w_conv"].shape
    x_nhwc = jnp.transpose(x_nchw, (0, 2, 3, 1)).astype(jnp.float32)
    B, H, W, _ = x_nhwc.shape
    xp = jnp.pad(x_nhwc, ((0, 0), (1, 1), (1, 1), (0, 0)))
    feat = jnp.zeros((B, H, W, Cout), jnp.float32)
    for i in range(Kh):
        for j in range(Kw):
            feat = feat + jnp.einsum("bhwc,co->bhwo",
                                     xp[:, i:i + H, j:j + W, :],
                                     params["w_conv"][i, j])
    feat = jnp.maximum(feat + params["b_conv"], 0.0)
    pooled = feat.mean(axis=(1, 2))
    z = pooled @ params["w_fc"] + params["b_fc"]
    return z, pooled


# ----------------------------------------------------------------------------
if __name__ == "__main__":
    key = jax.random.PRNGKey(0)
    k_param, k_x = jax.random.split(key)

    source_id = 0
    B, C, H, W = 2, 4, 16, 16
    params = init_encoder_params(k_param, cin=C, cout=16, dim_l=32)
    x = jax.random.normal(k_x, (B, C, H, W), jnp.float32)
    x_dict = {str(source_id): x}

    extractor = PallasEncoderExtractor(params, source_id)
    out = extractor(x_dict)
    z = jax.block_until_ready(out["z"][source_id])
    pooled = jax.block_until_ready(out["attrs"]["latents"]["pooled"])

    assert z.shape == (B, 32), z.shape
    assert pooled.shape == (B, 16), pooled.shape

    # Numerical check vs pure-JAX f32 reference (bf16 MXU operands -> loose tol).
    z_ref, pooled_ref = _reference_forward(params, x)
    assert jnp.allclose(z, z_ref, atol=5e-2, rtol=5e-2), \
        float(jnp.max(jnp.abs(z - z_ref)))
    assert jnp.allclose(pooled, pooled_ref, atol=5e-2, rtol=5e-2), \
        float(jnp.max(jnp.abs(pooled - pooled_ref)))

    print("KERNEL_OK")
</pallas_src>

<mosaic_0001>
module attributes {stable_mosaic.version = 11 : i64} {
  func.func @_fused_encoder_kernel(%arg0: i32, %arg1: memref<1x16x216xbf16, #tpu.memory_space<vmem>>, %arg2: memref<216x256xbf16, #tpu.memory_space<vmem>>, %arg3: memref<1x256xf32, #tpu.memory_space<vmem>>, %arg4: memref<256x128xf32, #tpu.memory_space<vmem>>, %arg5: memref<1x128xf32, #tpu.memory_space<vmem>>, %arg6: memref<1x1x128xf32, #tpu.memory_space<vmem>>) attributes {dimension_semantics = [#tpu.dimension_semantics<parallel>], iteration_bounds = array<i64: 2>, scalar_prefetch = 0 : i64, scratch_operands = 0 : i64, tpu.core_type = #tpu.core_type<tc>, window_params = [{transform_indices = @transform_0, window_bounds = array<i64: 1, 16, 216>}, {pipeline_mode = #tpu.pipeline_mode<synchronous>, transform_indices = @transform_1, window_bounds = array<i64: 216, 256>}, {pipeline_mode = #tpu.pipeline_mode<synchronous>, transform_indices = @transform_2, window_bounds = array<i64: 1, 256>}, {pipeline_mode = #tpu.pipeline_mode<synchronous>, transform_indices = @transform_3, window_bounds = array<i64: 256, 128>}, {pipeline_mode = #tpu.pipeline_mode<synchronous>, transform_indices = @transform_4, window_bounds = array<i64: 1, 128>}, {transform_indices = @transform_5, window_bounds = array<i64: 1, 1, 128>}]} {
    %c0 = arith.constant 0 : index
    %c0_0 = arith.constant 0 : index
    %c0_1 = arith.constant 0 : index
    %0 = vector.load %arg1[%c0, %c0_0, %c0_1] : memref<1x16x216xbf16, #tpu.memory_space<vmem>>, vector<1x16x216xbf16>
    %1 = vector.shape_cast %0 : vector<1x16x216xbf16> to vector<16x216xbf16>
    %c0_2 = arith.constant 0 : index
    %c0_3 = arith.constant 0 : index
    %2 = vector.load %arg2[%c0_2, %c0_3] : memref<216x256xbf16, #tpu.memory_space<vmem>>, vector<216x256xbf16>
    %cst = arith.constant dense<0.000000e+00> : vector<16x256xf32>
    %3 = tpu.matmul %1, %2, %cst {dimension_numbers = #tpu.dot_dimension_numbers<[1], [0], [0], [1], [0, 0, 1, 1], [], []>} : vector<16x216xbf16>, vector<216x256xbf16>, vector<16x256xf32> -> vector<16x256xf32>
    %c0_4 = arith.constant 0 : index
    %c0_5 = arith.constant 0 : index
    %4 = vector.load %arg3[%c0_4, %c0_5] : memref<1x256xf32, #tpu.memory_space<vmem>>, vector<1x256xf32>
    %5 = vector.broadcast %4 : vector<1x256xf32> to vector<16x256xf32>
    %6 = arith.addf %3, %5 : vector<16x256xf32>
    %cst_6 = arith.constant 0.000000e+00 : f32
    %7 = vector.broadcast %cst_6 : f32 to vector<16x256xf32>
    %8 = arith.maximumf %6, %7 : vector<16x256xf32>
    %cst_7 = arith.constant dense<0.000000e+00> : vector<256xf32>
    %9 = vector.multi_reduction <add>, %8, %cst_7 [0] : vector<16x256xf32> to vector<256xf32>
    %10 = vector.shape_cast %9 : vector<256xf32> to vector<1x256xf32>
    %c0_8 = arith.constant 0 : index
    %c0_9 = arith.constant 0 : index
    %11 = vector.load %arg4[%c0_8, %c0_9] : memref<256x128xf32, #tpu.memory_space<vmem>>, vector<256x128xf32>
    %cst_10 = arith.constant dense<0.000000e+00> : vector<1x128xf32>
    %12 = tpu.matmul %10, %11, %cst_10 {dimension_numbers = #tpu.dot_dimension_numbers<[1], [0], [0], [1], [0, 0, 1, 1], [], []>} : vector<1x256xf32>, vector<256x128xf32>, vector<1x128xf32> -> vector<1x128xf32>
    %c0_11 = arith.constant 0 : index
    %c0_12 = arith.constant 0 : index
    %13 = vector.load %arg5[%c0_11, %c0_12] : memref<1x128xf32, #tpu.memory_space<vmem>>, vector<1x128xf32>
    %14 = arith.addf %12, %13 : vector<1x128xf32>
    %c0_13 = arith.constant 0 : index
    %c0_14 = arith.constant 0 : index
    %c0_15 = arith.constant 0 : index
    %15 = vector.load %arg6[%c0_13, %c0_14, %c0_15] : memref<1x1x128xf32, #tpu.memory_space<vmem>>, vector<1x1x128xf32>
    %16 = vector.shape_cast %15 : vector<1x1x128xf32> to vector<1x128xf32>
    %17 = vector.shape_cast %14 : vector<1x128xf32> to vector<1x1x128xf32>
    tpu.vector_store %arg6[%c0_13, %c0_14, %c0_15], %17 {strides = array<i32>} : memref<1x1x128xf32, #tpu.memory_space<vmem>>, vector<1x1x128xf32>,
    return
  }
  func.func @transform_0(%arg0: i32) -> (i32, i32, i32) {
    %c0_i32 = arith.constant 0 : i32
    %c0_i32_0 = arith.constant 0 : i32
    %c0_i32_1 = arith.constant 0 : i32
    return %arg0, %c0_i32, %c0_i32_0 : i32, i32, i32
  }
  func.func @transform_1(%arg0: i32) -> (i32, i32) {
    %c0_i32 = arith.constant 0 : i32
    %c0_i32_0 = arith.constant 0 : i32
    %c0_i32_1 = arith.constant 0 : i32
    return %c0_i32, %c0_i32_0 : i32, i32
  }
  func.func @transform_2(%arg0: i32) -> (i32, i32) {
    %c0_i32 = arith.constant 0 : i32
    %c0_i32_0 = arith.constant 0 : i32
    %c0_i32_1 = arith.constant 0 : i32
    return %c0_i32, %c0_i32_0 : i32, i32
  }
  func.func @transform_3(%arg0: i32) -> (i32, i32) {
    %c0_i32 = arith.constant 0 : i32
    %c0_i32_0 = arith.constant 0 : i32
    %c0_i32_1 = arith.constant 0 : i32
    return %c0_i32, %c0_i32_0 : i32, i32
  }
  func.func @transform_4(%arg0: i32) -> (i32, i32) {
    %c0_i32 = arith.constant 0 : i32
    %c0_i32_0 = arith.constant 0 : i32
    %c0_i32_1 = arith.constant 0 : i32
    return %c0_i32, %c0_i32_0 : i32, i32
  }
  func.func @transform_5(%arg0: i32) -> (i32, i32, i32) {
    %c0_i32 = arith.constant 0 : i32
    %c0_i32_0 = arith.constant 0 : i32
    %c0_i32_1 = arith.constant 0 : i32
    return %arg0, %c0_i32, %c0_i32_0 : i32, i32, i32
  }
}

</mosaic_0001>

<llo_original>
// kernel: _encoder_forward_impl.1
$region0: #{_encoder_forward_impl.1}
  #allocation0 [shape = 'u32[]', space=smem, size = 0x4, offset = 0x4, fixed_abs, tag = 'smem constant byte address 0x4 - core index']
  #allocation1 [shape = 'u32[144,128]{1,0:T(1,128)}', space=vmem, size = 0x12000, scoped, tag = 'internal scratch']
  %s0 = inlined_call_operand.vmem [shape: bf16[2,16,216], index: 0, kind: input, shape index: {}]
  %s1 = inlined_call_operand.vmem [shape: bf16[216,256], index: 1, kind: input, shape index: {}]
  %s2 = inlined_call_operand.vmem [shape: f32[1,256], index: 2, kind: input, shape index: {}]
  %s3 = inlined_call_operand.vmem [shape: f32[256,128], index: 3, kind: input, shape index: {}]
  %s4 = inlined_call_operand.vmem [shape: f32[1,128], index: 4, kind: input, shape index: {}]
  %s5 = inlined_call_operand.vmem [shape: f32[2,1,128], index: 5, kind: output, shape index: {}]
  %s6 = sld [smem:[#allocation0]]
  $region53: #{_encoder_forward_impl.1} parent=0
    _
  %s8 = ssub.s32 1, %s6
  %s9 = scalar_select 0, %s8, %s6
  loop: start=0, step=1, limit=4
  $region2: #{_encoder_forward_impl.1} parent=0 // loop_pre_header
    _
  $region3: #{_encoder_forward_impl.1} parent=0 // loop_header
    %s11 = sphi 0, %s15
    %p12 = scmp.ge.s32.totalorder %s11, 4
    %s21 = sphi 0, %s23
    %s24 = sphi 0, %s21
    %s25 = sphi 0, %s24
    %s41 = sphi 0, %s25
    %s45 = sphi 0, %s45
    %s47 = sphi 0, %s45
    %s48 = sphi 0, %s47
    %s62 = sphi 0, %s48
    %s66 = sphi 0, %s66
    %s68 = sphi 0, %s66
    %s69 = sphi 0, %s68
    %s83 = sphi 0, %s69
    %s87 = sphi 0, %s87
    %s89 = sphi 0, %s87
    %s90 = sphi 0, %s89
    %s104 = sphi 0, %s90
    %s108 = sphi 0, %s108
    %s110 = sphi 0, %s108
    %s111 = sphi 0, %s110
    %s125 = sphi 0, %s111
    %s131 = sphi 0, %s133
    %s134 = sphi 0, %s131
    %s135 = sphi 0, %s134
    %s151 = sphi 0, %s135
  $region4: #{_encoder_forward_impl.1} parent=0 // loop_header_branch
    %14 = sbr.rel (%p12) target = $region8
  $region5: #{_encoder_forward_impl.1} parent=0 // loop_body
    %s16 = ssub.s32 %s11, 1
    %s17 = ssub.s32 %s11, 2
    %s18 = sadd.s32 %s11, 1
    %s19 = ssub.s32 %s11, %s18
    %p20 = scmp.eq.s32.totalorder %s19, 0
    %s22 = sadd.s32 %s21, 1
    %s23 = scalar_select %p20, %s21, %s22
    %p26 = pneg %p20
    %p27 = scmp.eq.s32.totalorder %s11, 1
    %p28 = por %p26, %p27
    %p29 = scmp.ne.s32.totalorder %s21, %s24
    %p30 = scmp.eq.s32.totalorder %s11, 0
    %p31 = por %p29, %p30
    %p32 = scmp.ne.s32.totalorder %s21, %s24
    %p33 = scmp.eq.s32.totalorder %s16, 1
    %p34 = por %p32, %p33
    %p35 = scmp.ne.s32.totalorder %s24, %s25
    %p36 = scmp.eq.s32.totalorder %s16, 0
    %p37 = por %p35, %p36
    %p38 = scmp.ne.s32.totalorder %s24, %s25
    %p39 = scmp.eq.s32.totalorder %s17, 1
    %p40 = por %p38, %p39
    %p42 = scmp.ne.s32.totalorder %s25, %s41
    %p43 = scmp.eq.s32.totalorder %s17, 0
    %p44 = por %p42, %p43
    %s46 = sadd.s32 %s45, 1
    %p49 = scmp.eq.s32.totalorder %s11, 1
    %p50 = scmp.ne.s32.totalorder %s45, %s47
    %p51 = scmp.eq.s32.totalorder %s11, 0
    %p52 = por %p50, %p51
    %p53 = scmp.ne.s32.totalorder %s45, %s47
    %p54 = scmp.eq.s32.totalorder %s16, 1
    %p55 = por %p53, %p54
    %p56 = scmp.ne.s32.totalorder %s47, %s48
    %p57 = scmp.eq.s32.totalorder %s16, 0
    %p58 = por %p56, %p57
    %p59 = scmp.ne.s32.totalorder %s47, %s48
    %p60 = scmp.eq.s32.totalorder %s17, 1
    %p61 = por %p59, %p60
    %p63 = scmp.ne.s32.totalorder %s48, %s62
    %p64 = scmp.eq.s32.totalorder %s17, 0
    %p65 = por %p63, %p64
    %s67 = sadd.s32 %s66, 1
    %p70 = scmp.eq.s32.totalorder %s11, 1
    %p71 = scmp.ne.s32.totalorder %s66, %s68
    %p72 = scmp.eq.s32.totalorder %s11, 0
    %p73 = por %p71, %p72
    %p74 = scmp.ne.s32.totalorder %s66, %s68
    %p75 = scmp.eq.s32.totalorder %s16, 1
    %p76 = por %p74, %p75
    %p77 = scmp.ne.s32.totalorder %s68, %s69
    %p78 = scmp.eq.s32.totalorder %s16, 0
    %p79 = por %p77, %p78
    %p80 = scmp.ne.s32.totalorder %s68, %s69
    %p81 = scmp.eq.s32.totalorder %s17, 1
    %p82 = por %p80, %p81
    %p84 = scmp.ne.s32.totalorder %s69, %s83
    %p85 = scmp.eq.s32.totalorder %s17, 0
    %p86 = por %p84, %p85
    %s88 = sadd.s32 %s87, 1
    %p91 = scmp.eq.s32.totalorder %s11, 1
    %p92 = scmp.ne.s32.totalorder %s87, %s89
    %p93 = scmp.eq.s32.totalorder %s11, 0
    %p94 = por %p92, %p93
    %p95 = scmp.ne.s32.totalorder %s87, %s89
    %p96 = scmp.eq.s32.totalorder %s16, 1
    %p97 = por %p95, %p96
    %p98 = scmp.ne.s32.totalorder %s89, %s90
    %p99 = scmp.eq.s32.totalorder %s16, 0
    %p100 = por %p98, %p99
    %p101 = scmp.ne.s32.totalorder %s89, %s90
    %p102 = scmp.eq.s32.totalorder %s17, 1
    %p103 = por %p101, %p102
    %p105 = scmp.ne.s32.totalorder %s90, %s104
    %p106 = scmp.eq.s32.totalorder %s17, 0
    %p107 = por %p105, %p106
    %s109 = sadd.s32 %s108, 1
    %p112 = scmp.eq.s32.totalorder %s11, 1
    %p113 = scmp.ne.s32.totalorder %s108, %s110
    %p114 = scmp.eq.s32.totalorder %s11, 0
    %p115 = por %p113, %p114
    %p116 = scmp.ne.s32.totalorder %s108, %s110
    %p117 = scmp.eq.s32.totalorder %s16, 1
    %p118 = por %p116, %p117
    %p119 = scmp.ne.s32.totalorder %s110, %s111
    %p120 = scmp.eq.s32.totalorder %s16, 0
    %p121 = por %p119, %p120
    %p122 = scmp.ne.s32.totalorder %s110, %s111
    %p123 = scmp.eq.s32.totalorder %s17, 1
    %p124 = por %p122, %p123
    %p126 = scmp.ne.s32.totalorder %s111, %s125
    %p127 = scmp.eq.s32.totalorder %s17, 0
    %p128 = por %p126, %p127
    %s129 = ssub.s32 %s11, %s18
    %p130 = scmp.eq.s32.totalorder %s129, 0
    %s132 = sadd.s32 %s131, 1
    %s133 = scalar_select %p130, %s131, %s132
    %p136 = pneg %p130
    %p137 = scmp.eq.s32.totalorder %s11, 1
    %p138 = por %p136, %p137
    %p139 = scmp.ne.s32.totalorder %s131, %s134
    %p140 = scmp.eq.s32.totalorder %s11, 0
    %p141 = por %p139, %p140
    %p142 = scmp.ne.s32.totalorder %s131, %s134
    %p143 = scmp.eq.s32.totalorder %s16, 1
    %p144 = por %p142, %p143
    %p145 = scmp.ne.s32.totalorder %s134, %s135
    %p146 = scmp.eq.s32.totalorder %s16, 0
    %p147 = por %p145, %p146
    %p148 = scmp.ne.s32.totalorder %s134, %s135
    %p149 = scmp.eq.s32.totalorder %s17, 1
    %p150 = por %p148, %p149
    %p152 = scmp.ne.s32.totalorder %s135, %s151
    %p153 = scmp.eq.s32.totalorder %s17, 0
    %p154 = por %p152, %p153
    %p155 = scmp.le.s32.totalorder 1, %s11
    %p156 = scmp.lt.s32.totalorder %s11, 3
    %p157 = pnand %p155, %p156
    %p158 = pneg %p157
    // Predicated region
    $region9: #{_encoder_forward_impl.1} parent=5 // pred_check
      _
    $region10: #{_encoder_forward_impl.1} parent=5 // pred_check_branch
      %160 = sbr.rel (%p157) target = $region12
    $region11: #{_encoder_forward_impl.1} parent=5 // pred_region
      %s161 = ssub.s32 %s11, 1
      // Predicated region
      $region13: #{_encoder_forward_impl.1} parent=11 // pred_check
        %p162 = pneg %p58
      $region14: #{_encoder_forward_impl.1} parent=11 // pred_check_branch
        %164 = sbr.rel (%p162) target = $region16
      $region15: #{_encoder_forward_impl.1} parent=11 // pred_region
        _
      $region16: #{_encoder_forward_impl.1} parent=11 // pred_fallthru
        _
      // Predicated region
      $region17: #{_encoder_forward_impl.1} parent=11 // pred_check
        %p165 = pneg %p79
      $region18: #{_encoder_forward_impl.1} parent=11 // pred_check_branch
        %167 = sbr.rel (%p165) target = $region20
      $region19: #{_encoder_forward_impl.1} parent=11 // pred_region
        _
      $region20: #{_encoder_forward_impl.1} parent=11 // pred_fallthru
        _
      // Predicated region
      $region21: #{_encoder_forward_impl.1} parent=11 // pred_check
        %p168 = pneg %p100
      $region22: #{_encoder_forward_impl.1} parent=11 // pred_check_branch
        %170 = sbr.rel (%p168) target = $region24
      $region23: #{_encoder_forward_impl.1} parent=11 // pred_region
        _
      $region24: #{_encoder_forward_impl.1} parent=11 // pred_fallthru
        _
      // Predicated region
      $region25: #{_encoder_forward_impl.1} parent=11 // pred_check
        %p171 = pneg %p121
      $region26: #{_encoder_forward_impl.1} parent=11 // pred_check_branch
        %173 = sbr.rel (%p171) target = $region28
      $region27: #{_encoder_forward_impl.1} parent=11 // pred_region
        _
      $region28: #{_encoder_forward_impl.1} parent=11 // pred_fallthru
        _
    $region12: #{_encoder_forward_impl.1} parent=5 // pred_fallthru
      _
    %p174 = scmp.lt.s32.totalorder %s11, 2
    // Predicated region
    $region29: #{_encoder_forward_impl.1} parent=5 // pred_check
      %p175 = pneg %p174
    $region30: #{_encoder_forward_impl.1} parent=5 // pred_check_branch
      %177 = sbr.rel (%p175) target = $region32
    $region31: #{_encoder_forward_impl.1} parent=5 // pred_region
      // Predicated region
      $region33: #{_encoder_forward_impl.1} parent=31 // pred_check
        %p178 = pneg %p31
      $region34: #{_encoder_forward_impl.1} parent=31 // pred_check_branch
        %180 = sbr.rel (%p178) target = $region36
      $region35: #{_encoder_forward_impl.1} parent=31 // pred_region
        %p181 = scmp.lt.s32.totalorder %s11, 1
        %s182 = scalar_select %p181, %s11, 1
        %s183 = smul.addr %s182, 4
        %s184 = smul.addr %s183, 4
        %s185 = scalar_lea.vmem %s0, %s184
      $region36: #{_encoder_forward_impl.1} parent=31 // pred_fallthru
        _
    $region32: #{_encoder_forward_impl.1} parent=5 // pred_fallthru
      _
    %p186 = scmp.le.s32.totalorder 1, %s11
    %p187 = scmp.lt.s32.totalorder %s11, 3
    %p188 = pnand %p186, %p187
    %p189 = pneg %p188
    // Predicated region
    $region37: #{_encoder_forward_impl.1} parent=5 // pred_check
      _
    $region38: #{_encoder_forward_impl.1} parent=5 // pred_check_branch
      %191 = sbr.rel (%p188) target = $region40
    $region39: #{_encoder_forward_impl.1} parent=5 // pred_region
      %s192 = ssub.s32 %s11, 1
      %p193 = scmp.lt.s32.totalorder %s16, 1
      %s194 = scalar_select %p193, %s16, 1
      %s195 = smul.addr %s194, 4
      %s196 = smul.addr %s195, 4
      %s197 = scalar_lea.vmem %s0, %s196
      %p198 = pneg %p37
      %p199 = pneg %p34
      %p200 = pneg %p58
      %p201 = pneg %p55
      %p202 = pneg %p79
      %p203 = pneg %p76
      %p204 = pneg %p100
      %p205 = pneg %p97
      %p206 = pneg %p121
      %p207 = pneg %p118
      %p208 = pneg %p147
      %p209 = pneg %p144
      %p210 = scmp.lt.s32.totalorder %s16, 1
      %s211 = scalar_select %p210, %s16, 1
      %s212 = scalar_lea.vmem %s5, %s211
      %p213 = scmp.lt.s32.totalorder %s16, 1
      %s214 = scalar_select %p213, %s16, 1
      %s215 = smul.addr %s214, 4
      %s216 = smul.addr %s215, 4
      %s217 = scalar_lea.vmem %s0, %s216
      %p218 = scmp.lt.s32.totalorder %s16, 1
      %s219 = scalar_select %p218, %s16, 1
      %s220 = scalar_lea.vmem %s5, %s219
      %v222 = vld [vmem:[%s217] sm:$0xff]
      %v223 = vld [vmem:[%s217 + $0x8] sm:$0xff]
      %v224 = vld [vmem:[%s1] sm:$0xff]
      %v225 = vld [vmem:[%s1 + $0x8] sm:$0xff]
      %v226 = vld [vmem:[%s1 + $0x10] sm:$0xff]
      %v227 = vld [vmem:[%s1 + $0x18] sm:$0xff]
      %v228 = vld [vmem:[%s1 + $0x20] sm:$0xff]
      %v229 = vld [vmem:[%s1 + $0x28] sm:$0xff]
      %v230 = vld [vmem:[%s1 + $0x30] sm:$0xff]
      %v231 = vld [vmem:[%s1 + $0x38] sm:$0xff]
      %v232 = vld [vmem:[%s1 + $0x40] sm:$0xff]
      %v233 = vld [vmem:[%s1 + $0x48] sm:$0xff]
      %v234 = vld [vmem:[%s1 + $0x50] sm:$0xff]
      %v235 = vld [vmem:[%s1 + $0x58] sm:$0xff]
      %v236 = vld [vmem:[%s1 + $0x60] sm:$0xff]
      %v237 = vld [vmem:[%s1 + $0x68] sm:$0xff]
      %v238 = vld [vmem:[%s1 + $0x70] sm:$0xff]
      %v239 = vld [vmem:[%s1 + $0x78] sm:$0xff]
      %v240 = vld [vmem:[%s1 + $0x80] sm:$0xff]
      %v241 = vld [vmem:[%s1 + $0x88] sm:$0xff]
      %v242 = vld [vmem:[%s1 + $0x90] sm:$0xff]
      %v243 = vld [vmem:[%s1 + $0x98] sm:$0xff]
      %v244 = vld [vmem:[%s1 + $0xa0] sm:$0xff]
      %v245 = vld [vmem:[%s1 + $0xa8] sm:$0xff]
      %v246 = vld [vmem:[%s1 + $0xb0] sm:$0xff]
      %v247 = vld [vmem:[%s1 + $0xb8] sm:$0xff]
      %v248 = vld [vmem:[%s1 + $0xc0] sm:$0xff]
      %v249 = vld [vmem:[%s1 + $0xc8] sm:$0xff]
      %v250 = vld [vmem:[%s1 + $0xd0] sm:$0xff]
      %v251 = vld [vmem:[%s2] sm:$0x3]
      %v253 = vlaneseq
      %v254 = vshrl.u32 %v253, 7
      %v255 = vsub.s32 0, %v254
      %v256 = vrot.slane %v251, %v255
      %v257 = vlaneseq
      %v258 = vshrl.u32 %v257, 7
      %v259 = vsub.s32 1, %v258
      %v260 = vrot.slane %v251, %v259
      %v265 = vunpack.c.l.b16 %v222
      %v266 = vunpack.c.h.b16 %v222
      %v267 = vunpack.c.l.b16 %v223
      %v268 = vunpack.c.h.b16 %v223
      %v269 = vpack.c.b16 %v267, %v265
      %v270 = vpack.c.b16 %v268, %v266
      %v299 = vunpack.c.l.b16 %v224
      %v300 = vunpack.c.h.b16 %v224
      %v301 = vunpack.c.l.b16 %v225
      %v302 = vunpack.c.h.b16 %v225
      %v303 = vunpack.c.l.b16 %v226
      %v304 = vunpack.c.h.b16 %v226
      %v305 = vunpack.c.l.b16 %v227
      %v306 = vunpack.c.h.b16 %v227
      %v307 = vunpack.c.l.b16 %v228
      %v308 = vunpack.c.h.b16 %v228
      %v309 = vunpack.c.l.b16 %v229
      %v310 = vunpack.c.h.b16 %v229
      %v311 = vunpack.c.l.b16 %v230
      %v312 = vunpack.c.h.b16 %v230
      %v313 = vunpack.c.l.b16 %v231
      %v314 = vunpack.c.h.b16 %v231
      %v315 = vunpack.c.l.b16 %v232
      %v316 = vunpack.c.h.b16 %v232
      %v317 = vunpack.c.l.b16 %v233
      %v318 = vunpack.c.h.b16 %v233
      %v319 = vunpack.c.l.b16 %v234
      %v320 = vunpack.c.h.b16 %v234
      %v321 = vunpack.c.l.b16 %v235
      %v322 = vunpack.c.h.b16 %v235
      %v323 = vunpack.c.l.b16 %v236
      %v324 = vunpack.c.h.b16 %v236
      %v325 = vunpack.c.l.b16 %v237
      %v326 = vunpack.c.h.b16 %v237
      %v327 = vunpack.c.l.b16 %v238
      %v328 = vunpack.c.h.b16 %v238
      %v329 = vunpack.c.l.b16 %v239
      %v330 = vunpack.c.h.b16 %v239
      %v331 = vunpack.c.l.b16 %v240
      %v332 = vunpack.c.h.b16 %v240
      %v333 = vunpack.c.l.b16 %v241
      %v334 = vunpack.c.h.b16 %v241
      %v335 = vunpack.c.l.b16 %v242
      %v336 = vunpack.c.h.b16 %v242
      %v337 = vunpack.c.l.b16 %v243
      %v338 = vunpack.c.h.b16 %v243
      %v339 = vunpack.c.l.b16 %v244
      %v340 = vunpack.c.h.b16 %v244
      %v341 = vunpack.c.l.b16 %v245
      %v342 = vunpack.c.h.b16 %v245
      %v343 = vunpack.c.l.b16 %v246
      %v344 = vunpack.c.h.b16 %v246
      %v345 = vunpack.c.l.b16 %v247
      %v346 = vunpack.c.h.b16 %v247
      %v347 = vunpack.c.l.b16 %v248
      %v348 = vunpack.c.h.b16 %v248
      %v349 = vunpack.c.l.b16 %v249
      %v350 = vunpack.c.h.b16 %v249
      %v351 = vunpack.c.l.b16 %v250
      %v352 = vunpack.c.h.b16 %v250
      %v353 = vpack.c.b16 %v301, %v299
      %v354 = vpack.c.b16 %v302, %v300
      %v355 = vpack.c.b16 %v305, %v303
      %v356 = vpack.c.b16 %v306, %v304
      %v357 = vpack.c.b16 %v309, %v307
      %v358 = vpack.c.b16 %v310, %v308
      %v359 = vpack.c.b16 %v313, %v311
      %v360 = vpack.c.b16 %v314, %v312
      %v361 = vpack.c.b16 %v317, %v315
      %v362 = vpack.c.b16 %v318, %v316
      %v363 = vpack.c.b16 %v321, %v319
      %v364 = vpack.c.b16 %v322, %v320
      %v365 = vpack.c.b16 %v325, %v323
      %v366 = vpack.c.b16 %v326, %v324
      %v367 = vpack.c.b16 %v329, %v327
      %v368 = vpack.c.b16 %v330, %v328
      %v369 = vpack.c.b16 %v333, %v331
      %v370 = vpack.c.b16 %v334, %v332
      %v371 = vpack.c.b16 %v337, %v335
      %v372 = vpack.c.b16 %v338, %v336
      %v373 = vpack.c.b16 %v341, %v339
      %v374 = vpack.c.b16 %v342, %v340
      %v375 = vpack.c.b16 %v345, %v343
      %v376 = vpack.c.b16 %v346, %v344
      %v377 = vpack.c.b16 %v349, %v347
      %v378 = vpack.c.b16 %v350, %v348
      %v379 = vpack.c.b16 %v351, %v351
      %v380 = vpack.c.b16 %v352, %v352
      %vm407 = vcmask 719872
      %v409 = vsel %vm407, %v270, 0
      %vm411 = vcmask 1043456
      %v413 = vsel %vm411, %v379, 0
      %v416 = vsel %vm411, %v380, 0
      %418 = vmatprep.subr.bf16.mxu0 %v368
      %419 = vmatpush1.bf16.msra.mxu0 %v367
      %420 = vmatprep.subr.bf16.mxu0 %v366
      %421 = vmatpush1.bf16.msra.mxu0 %v365
      %422 = vmatprep.subr.bf16.mxu0 %v364
      %423 = vmatpush1.bf16.msra.mxu0 %v363
      %424 = vmatprep.subr.bf16.mxu0 %v362
      %425 = vmatpush1.bf16.msra.mxu0 %v361
      %426 = vmatprep.subr.bf16.mxu0 %v360
      %427 = vmatpush1.bf16.msra.mxu0 %v359
      %428 = vmatprep.subr.bf16.mxu0 %v358
      %429 = vmatpush1.bf16.msra.mxu0 %v357
      %430 = vmatprep.subr.bf16.mxu0 %v356
      %431 = vmatpush1.bf16.msra.mxu0 %v355
      %432 = vmatprep.subr.bf16.mxu0 %v354
      %433 = vmatpush1.bf16.msra.mxu0 %v353
      %434 = vmatprep.subr.bf16.mxu0 0
      %435 = vmatpush2.bf16.msra.mxu0 0
      %436 = vmatprep.subr.bf16.mxu0 0
      %437 = vmatpush2.bf16.msra.mxu0 0
      %438 = vmatprep.subr.bf16.mxu0 %v416
      %439 = vmatpush2.bf16.msra.mxu0 %v413
      %440 = vmatprep.subr.bf16.mxu0 %v378
      %441 = vmatpush2.bf16.msra.mxu0 %v377
      %442 = vmatprep.subr.bf16.mxu0 %v376
      %443 = vmatpush2.bf16.msra.mxu0 %v375
      %444 = vmatprep.subr.bf16.mxu0 %v374
      %445 = vmatpush2.bf16.msra.mxu0 %v373
      %446 = vmatprep.subr.bf16.mxu0 %v372
      %447 = vmatpush2.bf16.msra.mxu0 %v371
      %448 = vmatprep.subr.bf16.mxu0 %v370
      %449 = vmatpush2.bf16.msra.mxu0 %v369
      %450 = vmatprep.mubr.bf16.mxu0 %v409
      %451 = vmatmul.mubr.bf16.gmra.mxu0 %v269
      %v452 = vpop.f32.mrf.mxu0
      %v453 = vadd.f32 %v256, %v452
      %v454 = vpop.f32.mrf.mxu0
      %v455 = vadd.f32 %v260, %v454
      %v456 = vpop.f32.mrf.mxu0
      %v457 = vadd.f32 %v256, %v456
      %v458 = vpop.f32.mrf.mxu0
      %v459 = vadd.f32 %v260, %v458
      %460 = vdwg.mxu0
      %v461 = vmax.f32 %v453, 0.0
      %v462 = vmax.f32 %v455, 0.0
      %v463 = vmax.f32 %v457, 0.0
      %v464 = vmax.f32 %v459, 0.0
      %v465 = vadd.f32 %v461, %v463
      %v466 = vrot.slane %v465, 4
      %v467 = vadd.f32 %v465, %v466
      %v468 = vrot.slane %v467, 2
      %v469 = vadd.f32 %v467, %v468
      %v470 = vrot.slane %v469, 1
      %v471 = vadd.f32 %v469, %v470
      %v472 = vadd.f32 %v462, %v464
      %v473 = vrot.slane %v472, 4
      %v474 = vadd.f32 %v472, %v473
      %v475 = vrot.slane %v474, 2
      %v476 = vadd.f32 %v474, %v475
      %v477 = vrot.slane %v476, 1
      %v478 = vadd.f32 %v476, %v477
      %v479 = vld [vmem:[%s3] sm:$0xff]
      %v480 = vld [vmem:[%s3 + $0x8] sm:$0xff]
      %v481 = vld [vmem:[%s3 + $0x10] sm:$0xff]
      %v482 = vld [vmem:[%s3 + $0x18] sm:$0xff]
      %v483 = vld [vmem:[%s3 + $0x20] sm:$0xff]
      %v484 = vld [vmem:[%s3 + $0x28] sm:$0xff]
      %v485 = vld [vmem:[%s3 + $0x30] sm:$0xff]
      %v486 = vld [vmem:[%s3 + $0x38] sm:$0xff]
      %v487 = vld [vmem:[%s3 + $0x40] sm:$0xff]
      %v488 = vld [vmem:[%s3 + $0x48] sm:$0xff]
      %v489 = vld [vmem:[%s3 + $0x50] sm:$0xff]
      %v490 = vld [vmem:[%s3 + $0x58] sm:$0xff]
      %v491 = vld [vmem:[%s3 + $0x60] sm:$0xff]
      %v492 = vld [vmem:[%s3 + $0x68] sm:$0xff]
      %v493 = vld [vmem:[%s3 + $0x70] sm:$0xff]
      %v494 = vld [vmem:[%s3 + $0x78] sm:$0xff]
      %v495 = vld [vmem:[%s3 + $0x80] sm:$0xff]
      %v496 = vld [vmem:[%s3 + $0x88] sm:$0xff]
      %v497 = vld [vmem:[%s3 + $0x90] sm:$0xff]
      %v498 = vld [vmem:[%s3 + $0x98] sm:$0xff]
      %v499 = vld [vmem:[%s3 + $0xa0] sm:$0xff]
      %v500 = vld [vmem:[%s3 + $0xa8] sm:$0xff]
      %v501 = vld [vmem:[%s3 + $0xb0] sm:$0xff]
      %v502 = vld [vmem:[%s3 + $0xb8] sm:$0xff]
      %v503 = vld [vmem:[%s3 + $0xc0] sm:$0xff]
      %v504 = vld [vmem:[%s3 + $0xc8] sm:$0xff]
      %v505 = vld [vmem:[%s3 + $0xd0] sm:$0xff]
      %v506 = vld [vmem:[%s3 + $0xd8] sm:$0xff]
      %v507 = vld [vmem:[%s3 + $0xe0] sm:$0xff]
      %v508 = vld [vmem:[%s3 + $0xe8] sm:$0xff]
      %v509 = vld [vmem:[%s3 + $0xf0] sm:$0xff]
      %v510 = vld [vmem:[%s3 + $0xf8] sm:$0xff]
      %v511 = vld [vmem:[%s4] sm:$0x1]
      %512 = vmatprep.subr.mxu0 0.0
      %513 = vmatpush1.msra.mxu0 %v494
      %514 = vmatprep.subr.mxu0 0.0
      %515 = vmatpush1.msra.mxu0 %v493
      %516 = vmatprep.subr.mxu0 0.0
      %517 = vmatpush1.msra.mxu0 %v492
      %518 = vmatprep.subr.mxu0 0.0
      %519 = vmatpush1.msra.mxu0 %v491
      %520 = vmatprep.subr.mxu0 0.0
      %521 = vmatpush1.msra.mxu0 %v490
      %522 = vmatprep.subr.mxu0 0.0
      %523 = vmatpush1.msra.mxu0 %v489
      %524 = vmatprep.subr.mxu0 0.0
      %525 = vmatpush1.msra.mxu0 %v488
      %526 = vmatprep.subr.mxu0 0.0
      %527 = vmatpush1.msra.mxu0 %v487
      %528 = vmatprep.subr.mxu0 0.0
      %529 = vmatpush1.msra.mxu0 %v486
      %530 = vmatprep.subr.mxu0 0.0
      %531 = vmatpush1.msra.mxu0 %v485
      %532 = vmatprep.subr.mxu0 0.0
      %533 = vmatpush1.msra.mxu0 %v484
      %534 = vmatprep.subr.mxu0 0.0
      %535 = vmatpush1.msra.mxu0 %v483
      %536 = vmatprep.subr.mxu0 0.0
      %537 = vmatpush1.msra.mxu0 %v482
      %538 = vmatprep.subr.mxu0 0.0
      %539 = vmatpush1.msra.mxu0 %v481
      %540 = vmatprep.subr.mxu0 0.0
      %541 = vmatpush1.msra.mxu0 %v480
      %542 = vmatprep.subr.mxu0 0.0
      %543 = vmatpush1.msra.mxu0 %v479
      %544 = vmatprep.subr.mxu0 0.0
      %545 = vmatpush2.msra.mxu0 %v510
      %546 = vmatprep.subr.mxu0 0.0
      %547 = vmatpush2.msra.mxu0 %v509
      %548 = vmatprep.subr.mxu0 0.0
      %549 = vmatpush2.msra.mxu0 %v508
      %550 = vmatprep.subr.mxu0 0.0
      %551 = vmatpush2.msra.mxu0 %v507
      %552 = vmatprep.subr.mxu0 0.0
      %553 = vmatpush2.msra.mxu0 %v506
      %554 = vmatprep.subr.mxu0 0.0
      %555 = vmatpush2.msra.mxu0 %v505
      %556 = vmatprep.subr.mxu0 0.0
      %557 = vmatpush2.msra.mxu0 %v504
      %558 = vmatprep.subr.mxu0 0.0
      %559 = vmatpush2.msra.mxu0 %v503
      %560 = vmatprep.subr.mxu0 0.0
      %561 = vmatpush2.msra.mxu0 %v502
      %562 = vmatprep.subr.mxu0 0.0
      %563 = vmatpush2.msra.mxu0 %v501
      %564 = vmatprep.subr.mxu0 0.0
      %565 = vmatpush2.msra.mxu0 %v500
      %566 = vmatprep.subr.mxu0 0.0
      %567 = vmatpush2.msra.mxu0 %v499
      %568 = vmatprep.subr.mxu0 0.0
      %569 = vmatpush2.msra.mxu0 %v498
      %570 = vmatprep.subr.mxu0 0.0
      %571 = vmatpush2.msra.mxu0 %v497
      %572 = vmatprep.subr.mxu0 0.0
      %573 = vmatpush2.msra.mxu0 %v496
      %574 = vmatprep.subr.mxu0 0.0
      %575 = vmatpush2.msra.mxu0 %v495
      %576 = vmatprep.mubr.f32.mxu0 %v478
      %577 = vmatmul.mubr.f32.gmra.mxu0 %v471
      %v578 = vpop.f32.mrf.mxu0
      %v579 = vadd.f32 %v511, %v578
      %v580 = vpop.f32.mrf.mxu0
      %581 = vdwg.mxu0
      %582 = vst [vmem:[%s220] sm:$0x1] %v579
      %p583 = scmp.lt.s32.totalorder %s16, 1
      %s584 = scalar_select %p583, %s16, 1
      %s585 = scalar_lea.vmem %s5, %s584
      // Predicated region
      $region41: #{_encoder_forward_impl.1} parent=39 // pred_check
        %p586 = pneg %p144
      $region42: #{_encoder_forward_impl.1} parent=39 // pred_check_branch
        %588 = sbr.rel (%p586) target = $region44
      $region43: #{_encoder_forward_impl.1} parent=39 // pred_region
        _
      $region44: #{_encoder_forward_impl.1} parent=39 // pred_fallthru
        _
    $region40: #{_encoder_forward_impl.1} parent=5 // pred_fallthru
      _
    %p589 = scmp.le.s32.totalorder 2, %s11
    // Predicated region
    $region45: #{_encoder_forward_impl.1} parent=5 // pred_check
      %p590 = pneg %p589
    $region46: #{_encoder_forward_impl.1} parent=5 // pred_check_branch
      %592 = sbr.rel (%p590) target = $region48
    $region47: #{_encoder_forward_impl.1} parent=5 // pred_region
      %s593 = ssub.s32 %s11, 2
      // Predicated region
      $region49: #{_encoder_forward_impl.1} parent=47 // pred_check
        %p594 = pneg %p150
      $region50: #{_encoder_forward_impl.1} parent=47 // pred_check_branch
        %596 = sbr.rel (%p594) target = $region52
      $region51: #{_encoder_forward_impl.1} parent=47 // pred_region
        %p597 = scmp.lt.s32.totalorder %s17, 1
        %s598 = scalar_select %p597, %s17, 1
        %s599 = scalar_lea.vmem %s5, %s598
      $region52: #{_encoder_forward_impl.1} parent=47 // pred_fallthru
        _
    $region48: #{_encoder_forward_impl.1} parent=5 // pred_fallthru
      _
  $region6: #{_encoder_forward_impl.1} parent=0 // loop_footer
    %s15 = sadd.s32 1, %s11
  $region7: #{_encoder_forward_impl.1} parent=0 // loop_footer_branch
    %10 = sbr.rel target = $region3
  $region8: #{_encoder_forward_impl.1} parent=0 // loop_exit
    _

</llo_original>
